<compile_context>
chip_gen: v7x
topology: tpu7x:2x2x1
jax: 0.10.0
libtpu: 0.0.40
codegen_flags: <defaults>
</compile_context>

<pallas_src>
import jax
import jax.numpy as jnp
from jax.experimental import pallas as pl
from jax.experimental.pallas import tpu as pltpu


def ec_kernel(xg_ref, h0_ref, c0_ref, whh_ref, y_ref, hT_ref, cT_ref):
    B, H = hT_ref.shape
    S = y_ref.shape[1] // H

    x_gates = xg_ref[...]            # (S*B, 4H) f32, already includes inp_layer + bias
    whh = whh_ref[...]               # (H, 4H) bf16, loaded once, reused every step
    h = h0_ref[...]                  # (B, H) f32
    c = c0_ref[...]                  # (B, H) f32

    ys = []
    # S is small and static -> fully unrolled; h/c stay in vregs (loop carries),
    # giving the scheduler visibility across steps.
    # Forward-looking guard: for S >~ 32 switch to lax.fori_loop(unroll=2-4) writing
    # each h_t into a y_ref slice to avoid vreg spills / compile-time blow-up.
    for t in range(S):
        # ---- LSTM cell (bias=False), gate order [i, f, g, o] ----
        gates = x_gates[t * B:(t + 1) * B, :] + jnp.dot(
            h.astype(jnp.bfloat16), whh,
            preferred_element_type=jnp.float32)                  # (B, 4H), one vreg

        # sigmoid(x) == 0.5 * tanh(0.5 * x) + 0.5  (EUP tanh + 2 cheap VPU ops,
        # instead of exp + add + divide); two whole-vreg activation passes total.
        sig = 0.5 * jnp.tanh(0.5 * gates) + 0.5
        tah = jnp.tanh(gates)

        i_g = sig[:, 0 * H:1 * H]
        f_g = sig[:, 1 * H:2 * H]
        g_g = tah[:, 2 * H:3 * H]
        o_g = sig[:, 3 * H:4 * H]

        c = f_g * c + i_g * g_g
        h = o_g * jnp.tanh(c)
        ys.append(h)

    # lane-dense bulk write: (B, S*H) = (8, 256) -> two full unmasked vreg stores
    y_ref[...] = jnp.concatenate(ys, axis=1)
    hT_ref[...] = h
    cT_ref[...] = c


def ec_forward(x, h, params):
    """x: (S, B, I); h = (h0, c0), each (1, B, H). Returns (y, (hT, cT))."""
    h0, c0 = h
    S, B, I = x.shape
    H = params["w_hh"].shape[0]          # w_hh: (H, 4H) already transposed

    # --- off-kernel prologue: input-independent folding + lane-dense x projection ---
    #   (x @ w_inp + b_inp) @ w_ih == x @ (w_inp @ w_ih) + (b_inp @ w_ih)
    w_x = jnp.dot(params["w_inp"], params["w_ih"])         # (I, 4H)
    b_x = jnp.dot(params["b_inp"], params["w_ih"])         # (1, 4H)
    x_gates = jnp.dot(x.reshape(S * B, I), w_x) + b_x      # (S*B, 4H), lane dense
    whh_bf16 = params["w_hh"].astype(jnp.bfloat16)         # single-pass MXU RHS

    vmem = pl.BlockSpec(memory_space=pltpu.MemorySpace.VMEM)

    y2d, hT, cT = pl.pallas_call(
        ec_kernel,
        out_shape=(
            jax.ShapeDtypeStruct((B, S * H), jnp.float32),
            jax.ShapeDtypeStruct((B, H), jnp.float32),
            jax.ShapeDtypeStruct((B, H), jnp.float32),
        ),
        in_specs=[vmem] * 4,
        out_specs=(vmem, vmem, vmem),
    )(
        x_gates,                   # (S*B, 4H)
        h0[0],                     # (B, H)
        c0[0],                     # (B, H)
        whh_bf16,                  # (H, 4H) bf16
    )

    # (B, S*H) -> (S, B, H) relayout outside the kernel (layout plumbing only)
    y = y2d.reshape(B, S, H).transpose(1, 0, 2)
    return y, (hT[None], cT[None])


def ref_forward(x, h, params):
    """Pure-JAX reference of the same semantics (unfolded, like the module)."""
    h0, c0 = h
    S, B, I = x.shape
    H = params["w_hh"].shape[0]
    hs, cs = h0[0], c0[0]
    ys = []
    for t in range(S):
        xt = x[t] @ params["w_inp"] + params["b_inp"]
        gates = xt @ params["w_ih"] + hs @ params["w_hh"]
        i_g = jax.nn.sigmoid(gates[:, 0 * H:1 * H])
        f_g = jax.nn.sigmoid(gates[:, 1 * H:2 * H])
        g_g = jnp.tanh(gates[:, 2 * H:3 * H])
        o_g = jax.nn.sigmoid(gates[:, 3 * H:4 * H])
        cs = f_g * cs + i_g * g_g
        hs = o_g * jnp.tanh(cs)
        ys.append(hs)
    return jnp.stack(ys, axis=0), (hs[None], cs[None])


def init_params(key, input_size, hidden_size):
    """Deterministic parameter init mirroring the module's layer shapes."""
    k1, k2, k3, k4 = jax.random.split(key, 4)
    # inp_layer: nn.Linear(I, I)  (weight (I,I), bias (I,))
    w_inp = jax.random.normal(k1, (input_size, input_size), jnp.float32) * 0.3
    b_inp = jax.random.normal(k2, (1, input_size), jnp.float32) * 0.1
    # lstm1: weight_ih_l0 (4H, I), weight_hh_l0 (4H, H), bias=False
    w_ih = jax.random.normal(k3, (4 * hidden_size, input_size), jnp.float32) * 0.2
    w_hh = jax.random.normal(k4, (4 * hidden_size, hidden_size), jnp.float32) * 0.2
    return {
        "w_inp": w_inp.T,          # store transposed for x @ W^T
        "b_inp": b_inp,
        "w_ih": w_ih.T,            # (I, 4H)
        "w_hh": w_hh.T,            # (H, 4H)
    }


if __name__ == "__main__":
    SEQ, BATCH, INPUT, HIDDEN = 8, 8, 4, 32

    key = jax.random.PRNGKey(0)
    kx, kp = jax.random.split(key)

    x = jax.random.normal(kx, (SEQ, BATCH, INPUT), jnp.float32)
    h0 = jnp.zeros((1, BATCH, HIDDEN), jnp.float32)   # init_hidden()
    c0 = jnp.zeros((1, BATCH, HIDDEN), jnp.float32)
    params = init_params(kp, INPUT, HIDDEN)

    y, (hT, cT) = ec_forward(x, (h0, c0), params)
    jax.block_until_ready((y, hT, cT))

    y_ref, (hT_ref, cT_ref) = ref_forward(x, (h0, c0), params)
    # tolerance deliberately loosened: recurrent matmul runs as a single bf16 MXU pass
    assert jnp.allclose(y, y_ref, atol=2e-2, rtol=2e-2)
    assert jnp.allclose(hT, hT_ref, atol=2e-2, rtol=2e-2)
    assert jnp.allclose(cT, cT_ref, atol=2e-2, rtol=2e-2)

    print("KERNEL_OK")
</pallas_src>

<mosaic_0001>
module attributes {stable_mosaic.version = 11 : i64} {
  func.func @ec_kernel(%arg0: memref<64x128xf32, #tpu.memory_space<vmem>>, %arg1: memref<8x32xf32, #tpu.memory_space<vmem>>, %arg2: memref<8x32xf32, #tpu.memory_space<vmem>>, %arg3: memref<32x128xbf16, #tpu.memory_space<vmem>>, %arg4: memref<8x256xf32, #tpu.memory_space<vmem>>, %arg5: memref<8x32xf32, #tpu.memory_space<vmem>>, %arg6: memref<8x32xf32, #tpu.memory_space<vmem>>) attributes {dimension_semantics = [], scalar_prefetch = 0 : i64, scratch_operands = 0 : i64, tpu.core_type = #tpu.core_type<tc>} {
    %c0 = arith.constant 0 : index
    %c0_0 = arith.constant 0 : index
    %0 = vector.load %arg0[%c0, %c0_0] : memref<64x128xf32, #tpu.memory_space<vmem>>, vector<64x128xf32>
    %c0_1 = arith.constant 0 : index
    %c0_2 = arith.constant 0 : index
    %1 = vector.load %arg3[%c0_1, %c0_2] : memref<32x128xbf16, #tpu.memory_space<vmem>>, vector<32x128xbf16>
    %c0_3 = arith.constant 0 : index
    %c0_4 = arith.constant 0 : index
    %2 = vector.load %arg1[%c0_3, %c0_4] : memref<8x32xf32, #tpu.memory_space<vmem>>, vector<8x32xf32>
    %c0_5 = arith.constant 0 : index
    %c0_6 = arith.constant 0 : index
    %3 = vector.load %arg2[%c0_5, %c0_6] : memref<8x32xf32, #tpu.memory_space<vmem>>, vector<8x32xf32>
    %4 = vector.extract_strided_slice %0 {offsets = [0, 0], sizes = [8, 128], strides = [1, 1]} : vector<64x128xf32> to vector<8x128xf32>
    %5 = arith.truncf %2 : vector<8x32xf32> to vector<8x32xbf16>
    %cst = arith.constant dense<0.000000e+00> : vector<8x128xf32>
    %6 = tpu.matmul %5, %1, %cst {dimension_numbers = #tpu.dot_dimension_numbers<[1], [0], [0], [1], [0, 0, 1, 1], [], []>} : vector<8x32xbf16>, vector<32x128xbf16>, vector<8x128xf32> -> vector<8x128xf32>
    %7 = arith.addf %4, %6 : vector<8x128xf32>
    %cst_7 = arith.constant 5.000000e-01 : f32
    %8 = vector.broadcast %cst_7 : f32 to vector<8x128xf32>
    %9 = arith.mulf %8, %7 : vector<8x128xf32>
    %10 = math.tanh %9 : vector<8x128xf32>
    %cst_8 = arith.constant 5.000000e-01 : f32
    %11 = vector.broadcast %cst_8 : f32 to vector<8x128xf32>
    %12 = arith.mulf %11, %10 : vector<8x128xf32>
    %cst_9 = arith.constant 5.000000e-01 : f32
    %13 = vector.broadcast %cst_9 : f32 to vector<8x128xf32>
    %14 = arith.addf %12, %13 : vector<8x128xf32>
    %15 = math.tanh %7 : vector<8x128xf32>
    %16 = vector.extract_strided_slice %14 {offsets = [0, 0], sizes = [8, 32], strides = [1, 1]} : vector<8x128xf32> to vector<8x32xf32>
    %17 = vector.extract_strided_slice %14 {offsets = [0, 32], sizes = [8, 32], strides = [1, 1]} : vector<8x128xf32> to vector<8x32xf32>
    %18 = vector.extract_strided_slice %15 {offsets = [0, 64], sizes = [8, 32], strides = [1, 1]} : vector<8x128xf32> to vector<8x32xf32>
    %19 = vector.extract_strided_slice %14 {offsets = [0, 96], sizes = [8, 32], strides = [1, 1]} : vector<8x128xf32> to vector<8x32xf32>
    %20 = arith.mulf %17, %3 : vector<8x32xf32>
    %21 = arith.mulf %16, %18 : vector<8x32xf32>
    %22 = arith.addf %20, %21 : vector<8x32xf32>
    %23 = math.tanh %22 : vector<8x32xf32>
    %24 = arith.mulf %19, %23 : vector<8x32xf32>
    %25 = vector.extract_strided_slice %0 {offsets = [8, 0], sizes = [8, 128], strides = [1, 1]} : vector<64x128xf32> to vector<8x128xf32>
    %26 = arith.truncf %24 : vector<8x32xf32> to vector<8x32xbf16>
    %cst_10 = arith.constant dense<0.000000e+00> : vector<8x128xf32>
    %27 = tpu.matmul %26, %1, %cst_10 {dimension_numbers = #tpu.dot_dimension_numbers<[1], [0], [0], [1], [0, 0, 1, 1], [], []>} : vector<8x32xbf16>, vector<32x128xbf16>, vector<8x128xf32> -> vector<8x128xf32>
    %28 = arith.addf %25, %27 : vector<8x128xf32>
    %cst_11 = arith.constant 5.000000e-01 : f32
    %29 = vector.broadcast %cst_11 : f32 to vector<8x128xf32>
    %30 = arith.mulf %29, %28 : vector<8x128xf32>
    %31 = math.tanh %30 : vector<8x128xf32>
    %cst_12 = arith.constant 5.000000e-01 : f32
    %32 = vector.broadcast %cst_12 : f32 to vector<8x128xf32>
    %33 = arith.mulf %32, %31 : vector<8x128xf32>
    %cst_13 = arith.constant 5.000000e-01 : f32
    %34 = vector.broadcast %cst_13 : f32 to vector<8x128xf32>
    %35 = arith.addf %33, %34 : vector<8x128xf32>
    %36 = math.tanh %28 : vector<8x128xf32>
    %37 = vector.extract_strided_slice %35 {offsets = [0, 0], sizes = [8, 32], strides = [1, 1]} : vector<8x128xf32> to vector<8x32xf32>
    %38 = vector.extract_strided_slice %35 {offsets = [0, 32], sizes = [8, 32], strides = [1, 1]} : vector<8x128xf32> to vector<8x32xf32>
    %39 = vector.extract_strided_slice %36 {offsets = [0, 64], sizes = [8, 32], strides = [1, 1]} : vector<8x128xf32> to vector<8x32xf32>
    %40 = vector.extract_strided_slice %35 {offsets = [0, 96], sizes = [8, 32], strides = [1, 1]} : vector<8x128xf32> to vector<8x32xf32>
    %41 = arith.mulf %38, %22 : vector<8x32xf32>
    %42 = arith.mulf %37, %39 : vector<8x32xf32>
    %43 = arith.addf %41, %42 : vector<8x32xf32>
    %44 = math.tanh %43 : vector<8x32xf32>
    %45 = arith.mulf %40, %44 : vector<8x32xf32>
    %46 = vector.extract_strided_slice %0 {offsets = [16, 0], sizes = [8, 128], strides = [1, 1]} : vector<64x128xf32> to vector<8x128xf32>
    %47 = arith.truncf %45 : vector<8x32xf32> to vector<8x32xbf16>
    %cst_14 = arith.constant dense<0.000000e+00> : vector<8x128xf32>
    %48 = tpu.matmul %47, %1, %cst_14 {dimension_numbers = #tpu.dot_dimension_numbers<[1], [0], [0], [1], [0, 0, 1, 1], [], []>} : vector<8x32xbf16>, vector<32x128xbf16>, vector<8x128xf32> -> vector<8x128xf32>
    %49 = arith.addf %46, %48 : vector<8x128xf32>
    %cst_15 = arith.constant 5.000000e-01 : f32
    %50 = vector.broadcast %cst_15 : f32 to vector<8x128xf32>
    %51 = arith.mulf %50, %49 : vector<8x128xf32>
    %52 = math.tanh %51 : vector<8x128xf32>
    %cst_16 = arith.constant 5.000000e-01 : f32
    %53 = vector.broadcast %cst_16 : f32 to vector<8x128xf32>
    %54 = arith.mulf %53, %52 : vector<8x128xf32>
    %cst_17 = arith.constant 5.000000e-01 : f32
    %55 = vector.broadcast %cst_17 : f32 to vector<8x128xf32>
    %56 = arith.addf %54, %55 : vector<8x128xf32>
    %57 = math.tanh %49 : vector<8x128xf32>
    %58 = vector.extract_strided_slice %56 {offsets = [0, 0], sizes = [8, 32], strides = [1, 1]} : vector<8x128xf32> to vector<8x32xf32>
    %59 = vector.extract_strided_slice %56 {offsets = [0, 32], sizes = [8, 32], strides = [1, 1]} : vector<8x128xf32> to vector<8x32xf32>
    %60 = vector.extract_strided_slice %57 {offsets = [0, 64], sizes = [8, 32], strides = [1, 1]} : vector<8x128xf32> to vector<8x32xf32>
    %61 = vector.extract_strided_slice %56 {offsets = [0, 96], sizes = [8, 32], strides = [1, 1]} : vector<8x128xf32> to vector<8x32xf32>
    %62 = arith.mulf %59, %43 : vector<8x32xf32>
    %63 = arith.mulf %58, %60 : vector<8x32xf32>
    %64 = arith.addf %62, %63 : vector<8x32xf32>
    %65 = math.tanh %64 : vector<8x32xf32>
    %66 = arith.mulf %61, %65 : vector<8x32xf32>
    %67 = vector.extract_strided_slice %0 {offsets = [24, 0], sizes = [8, 128], strides = [1, 1]} : vector<64x128xf32> to vector<8x128xf32>
    %68 = arith.truncf %66 : vector<8x32xf32> to vector<8x32xbf16>
    %cst_18 = arith.constant dense<0.000000e+00> : vector<8x128xf32>
    %69 = tpu.matmul %68, %1, %cst_18 {dimension_numbers = #tpu.dot_dimension_numbers<[1], [0], [0], [1], [0, 0, 1, 1], [], []>} : vector<8x32xbf16>, vector<32x128xbf16>, vector<8x128xf32> -> vector<8x128xf32>
    %70 = arith.addf %67, %69 : vector<8x128xf32>
    %cst_19 = arith.constant 5.000000e-01 : f32
    %71 = vector.broadcast %cst_19 : f32 to vector<8x128xf32>
    %72 = arith.mulf %71, %70 : vector<8x128xf32>
    %73 = math.tanh %72 : vector<8x128xf32>
    %cst_20 = arith.constant 5.000000e-01 : f32
    %74 = vector.broadcast %cst_20 : f32 to vector<8x128xf32>
    %75 = arith.mulf %74, %73 : vector<8x128xf32>
    %cst_21 = arith.constant 5.000000e-01 : f32
    %76 = vector.broadcast %cst_21 : f32 to vector<8x128xf32>
    %77 = arith.addf %75, %76 : vector<8x128xf32>
    %78 = math.tanh %70 : vector<8x128xf32>
    %79 = vector.extract_strided_slice %77 {offsets = [0, 0], sizes = [8, 32], strides = [1, 1]} : vector<8x128xf32> to vector<8x32xf32>
    %80 = vector.extract_strided_slice %77 {offsets = [0, 32], sizes = [8, 32], strides = [1, 1]} : vector<8x128xf32> to vector<8x32xf32>
    %81 = vector.extract_strided_slice %78 {offsets = [0, 64], sizes = [8, 32], strides = [1, 1]} : vector<8x128xf32> to vector<8x32xf32>
    %82 = vector.extract_strided_slice %77 {offsets = [0, 96], sizes = [8, 32], strides = [1, 1]} : vector<8x128xf32> to vector<8x32xf32>
    %83 = arith.mulf %80, %64 : vector<8x32xf32>
    %84 = arith.mulf %79, %81 : vector<8x32xf32>
    %85 = arith.addf %83, %84 : vector<8x32xf32>
    %86 = math.tanh %85 : vector<8x32xf32>
    %87 = arith.mulf %82, %86 : vector<8x32xf32>
    %88 = vector.extract_strided_slice %0 {offsets = [32, 0], sizes = [8, 128], strides = [1, 1]} : vector<64x128xf32> to vector<8x128xf32>
    %89 = arith.truncf %87 : vector<8x32xf32> to vector<8x32xbf16>
    %cst_22 = arith.constant dense<0.000000e+00> : vector<8x128xf32>
    %90 = tpu.matmul %89, %1, %cst_22 {dimension_numbers = #tpu.dot_dimension_numbers<[1], [0], [0], [1], [0, 0, 1, 1], [], []>} : vector<8x32xbf16>, vector<32x128xbf16>, vector<8x128xf32> -> vector<8x128xf32>
    %91 = arith.addf %88, %90 : vector<8x128xf32>
    %cst_23 = arith.constant 5.000000e-01 : f32
    %92 = vector.broadcast %cst_23 : f32 to vector<8x128xf32>
    %93 = arith.mulf %92, %91 : vector<8x128xf32>
    %94 = math.tanh %93 : vector<8x128xf32>
    %cst_24 = arith.constant 5.000000e-01 : f32
    %95 = vector.broadcast %cst_24 : f32 to vector<8x128xf32>
    %96 = arith.mulf %95, %94 : vector<8x128xf32>
    %cst_25 = arith.constant 5.000000e-01 : f32
    %97 = vector.broadcast %cst_25 : f32 to vector<8x128xf32>
    %98 = arith.addf %96, %97 : vector<8x128xf32>
    %99 = math.tanh %91 : vector<8x128xf32>
    %100 = vector.extract_strided_slice %98 {offsets = [0, 0], sizes = [8, 32], strides = [1, 1]} : vector<8x128xf32> to vector<8x32xf32>
    %101 = vector.extract_strided_slice %98 {offsets = [0, 32], sizes = [8, 32], strides = [1, 1]} : vector<8x128xf32> to vector<8x32xf32>
    %102 = vector.extract_strided_slice %99 {offsets = [0, 64], sizes = [8, 32], strides = [1, 1]} : vector<8x128xf32> to vector<8x32xf32>
    %103 = vector.extract_strided_slice %98 {offsets = [0, 96], sizes = [8, 32], strides = [1, 1]} : vector<8x128xf32> to vector<8x32xf32>
    %104 = arith.mulf %101, %85 : vector<8x32xf32>
    %105 = arith.mulf %100, %102 : vector<8x32xf32>
    %106 = arith.addf %104, %105 : vector<8x32xf32>
    %107 = math.tanh %106 : vector<8x32xf32>
    %108 = arith.mulf %103, %107 : vector<8x32xf32>
    %109 = vector.extract_strided_slice %0 {offsets = [40, 0], sizes = [8, 128], strides = [1, 1]} : vector<64x128xf32> to vector<8x128xf32>
    %110 = arith.truncf %108 : vector<8x32xf32> to vector<8x32xbf16>
    %cst_26 = arith.constant dense<0.000000e+00> : vector<8x128xf32>
    %111 = tpu.matmul %110, %1, %cst_26 {dimension_numbers = #tpu.dot_dimension_numbers<[1], [0], [0], [1], [0, 0, 1, 1], [], []>} : vector<8x32xbf16>, vector<32x128xbf16>, vector<8x128xf32> -> vector<8x128xf32>
    %112 = arith.addf %109, %111 : vector<8x128xf32>
    %cst_27 = arith.constant 5.000000e-01 : f32
    %113 = vector.broadcast %cst_27 : f32 to vector<8x128xf32>
    %114 = arith.mulf %113, %112 : vector<8x128xf32>
    %115 = math.tanh %114 : vector<8x128xf32>
    %cst_28 = arith.constant 5.000000e-01 : f32
    %116 = vector.broadcast %cst_28 : f32 to vector<8x128xf32>
    %117 = arith.mulf %116, %115 : vector<8x128xf32>
    %cst_29 = arith.constant 5.000000e-01 : f32
    %118 = vector.broadcast %cst_29 : f32 to vector<8x128xf32>
    %119 = arith.addf %117, %118 : vector<8x128xf32>
    %120 = math.tanh %112 : vector<8x128xf32>
    %121 = vector.extract_strided_slice %119 {offsets = [0, 0], sizes = [8, 32], strides = [1, 1]} : vector<8x128xf32> to vector<8x32xf32>
    %122 = vector.extract_strided_slice %119 {offsets = [0, 32], sizes = [8, 32], strides = [1, 1]} : vector<8x128xf32> to vector<8x32xf32>
    %123 = vector.extract_strided_slice %120 {offsets = [0, 64], sizes = [8, 32], strides = [1, 1]} : vector<8x128xf32> to vector<8x32xf32>
    %124 = vector.extract_strided_slice %119 {offsets = [0, 96], sizes = [8, 32], strides = [1, 1]} : vector<8x128xf32> to vector<8x32xf32>
    %125 = arith.mulf %122, %106 : vector<8x32xf32>
    %126 = arith.mulf %121, %123 : vector<8x32xf32>
    %127 = arith.addf %125, %126 : vector<8x32xf32>
    %128 = math.tanh %127 : vector<8x32xf32>
    %129 = arith.mulf %124, %128 : vector<8x32xf32>
    %130 = vector.extract_strided_slice %0 {offsets = [48, 0], sizes = [8, 128], strides = [1, 1]} : vector<64x128xf32> to vector<8x128xf32>
    %131 = arith.truncf %129 : vector<8x32xf32> to vector<8x32xbf16>
    %cst_30 = arith.constant dense<0.000000e+00> : vector<8x128xf32>
    %132 = tpu.matmul %131, %1, %cst_30 {dimension_numbers = #tpu.dot_dimension_numbers<[1], [0], [0], [1], [0, 0, 1, 1], [], []>} : vector<8x32xbf16>, vector<32x128xbf16>, vector<8x128xf32> -> vector<8x128xf32>
    %133 = arith.addf %130, %132 : vector<8x128xf32>
    %cst_31 = arith.constant 5.000000e-01 : f32
    %134 = vector.broadcast %cst_31 : f32 to vector<8x128xf32>
    %135 = arith.mulf %134, %133 : vector<8x128xf32>
    %136 = math.tanh %135 : vector<8x128xf32>
    %cst_32 = arith.constant 5.000000e-01 : f32
    %137 = vector.broadcast %cst_32 : f32 to vector<8x128xf32>
    %138 = arith.mulf %137, %136 : vector<8x128xf32>
    %cst_33 = arith.constant 5.000000e-01 : f32
    %139 = vector.broadcast %cst_33 : f32 to vector<8x128xf32>
    %140 = arith.addf %138, %139 : vector<8x128xf32>
    %141 = math.tanh %133 : vector<8x128xf32>
    %142 = vector.extract_strided_slice %140 {offsets = [0, 0], sizes = [8, 32], strides = [1, 1]} : vector<8x128xf32> to vector<8x32xf32>
    %143 = vector.extract_strided_slice %140 {offsets = [0, 32], sizes = [8, 32], strides = [1, 1]} : vector<8x128xf32> to vector<8x32xf32>
    %144 = vector.extract_strided_slice %141 {offsets = [0, 64], sizes = [8, 32], strides = [1, 1]} : vector<8x128xf32> to vector<8x32xf32>
    %145 = vector.extract_strided_slice %140 {offsets = [0, 96], sizes = [8, 32], strides = [1, 1]} : vector<8x128xf32> to vector<8x32xf32>
    %146 = arith.mulf %143, %127 : vector<8x32xf32>
    %147 = arith.mulf %142, %144 : vector<8x32xf32>
    %148 = arith.addf %146, %147 : vector<8x32xf32>
    %149 = math.tanh %148 : vector<8x32xf32>
    %150 = arith.mulf %145, %149 : vector<8x32xf32>
    %151 = vector.extract_strided_slice %0 {offsets = [56, 0], sizes = [8, 128], strides = [1, 1]} : vector<64x128xf32> to vector<8x128xf32>
    %152 = arith.truncf %150 : vector<8x32xf32> to vector<8x32xbf16>
    %cst_34 = arith.constant dense<0.000000e+00> : vector<8x128xf32>
    %153 = tpu.matmul %152, %1, %cst_34 {dimension_numbers = #tpu.dot_dimension_numbers<[1], [0], [0], [1], [0, 0, 1, 1], [], []>} : vector<8x32xbf16>, vector<32x128xbf16>, vector<8x128xf32> -> vector<8x128xf32>
    %154 = arith.addf %151, %153 : vector<8x128xf32>
    %cst_35 = arith.constant 5.000000e-01 : f32
    %155 = vector.broadcast %cst_35 : f32 to vector<8x128xf32>
    %156 = arith.mulf %155, %154 : vector<8x128xf32>
    %157 = math.tanh %156 : vector<8x128xf32>
    %cst_36 = arith.constant 5.000000e-01 : f32
    %158 = vector.broadcast %cst_36 : f32 to vector<8x128xf32>
    %159 = arith.mulf %158, %157 : vector<8x128xf32>
    %cst_37 = arith.constant 5.000000e-01 : f32
    %160 = vector.broadcast %cst_37 : f32 to vector<8x128xf32>
    %161 = arith.addf %159, %160 : vector<8x128xf32>
    %162 = math.tanh %154 : vector<8x128xf32>
    %163 = vector.extract_strided_slice %161 {offsets = [0, 0], sizes = [8, 32], strides = [1, 1]} : vector<8x128xf32> to vector<8x32xf32>
    %164 = vector.extract_strided_slice %161 {offsets = [0, 32], sizes = [8, 32], strides = [1, 1]} : vector<8x128xf32> to vector<8x32xf32>
    %165 = vector.extract_strided_slice %162 {offsets = [0, 64], sizes = [8, 32], strides = [1, 1]} : vector<8x128xf32> to vector<8x32xf32>
    %166 = vector.extract_strided_slice %161 {offsets = [0, 96], sizes = [8, 32], strides = [1, 1]} : vector<8x128xf32> to vector<8x32xf32>
    %167 = arith.mulf %164, %148 : vector<8x32xf32>
    %168 = arith.mulf %163, %165 : vector<8x32xf32>
    %169 = arith.addf %167, %168 : vector<8x32xf32>
    %170 = math.tanh %169 : vector<8x32xf32>
    %171 = arith.mulf %166, %170 : vector<8x32xf32>
    %172 = tpu.concatenate %24, %45, %66, %87, %108, %129, %150, %171 in 1 : vector<8x32xf32>, vector<8x32xf32>, vector<8x32xf32>, vector<8x32xf32>, vector<8x32xf32>, vector<8x32xf32>, vector<8x32xf32>, vector<8x32xf32> -> vector<8x256xf32>
    %c0_38 = arith.constant 0 : index
    %c0_39 = arith.constant 0 : index
    %173 = vector.load %arg4[%c0_38, %c0_39] : memref<8x256xf32, #tpu.memory_space<vmem>>, vector<8x256xf32>
    tpu.vector_store %arg4[%c0_38, %c0_39], %172 {strides = array<i32>} : memref<8x256xf32, #tpu.memory_space<vmem>>, vector<8x256xf32>,
    %c0_40 = arith.constant 0 : index
    %c0_41 = arith.constant 0 : index
    %174 = vector.load %arg5[%c0_40, %c0_41] : memref<8x32xf32, #tpu.memory_space<vmem>>, vector<8x32xf32>
    tpu.vector_store %arg5[%c0_40, %c0_41], %171 {strides = array<i32>} : memref<8x32xf32, #tpu.memory_space<vmem>>, vector<8x32xf32>,
    %c0_42 = arith.constant 0 : index
    %c0_43 = arith.constant 0 : index
    %175 = vector.load %arg6[%c0_42, %c0_43] : memref<8x32xf32, #tpu.memory_space<vmem>>, vector<8x32xf32>
    tpu.vector_store %arg6[%c0_42, %c0_43], %169 {strides = array<i32>} : memref<8x32xf32, #tpu.memory_space<vmem>>, vector<8x32xf32>,
    return
  }
}

</mosaic_0001>

<llo_original>
// kernel: tpu_custom_call.1
$region0: #{tpu_custom_call.1}
  #allocation0 [shape = 'u32[]', space=smem, size = 0x4, offset = 0x4, fixed_abs, tag = 'smem constant byte address 0x4 - core index']
  #allocation1 [shape = 'u32[144,128]{1,0:T(1,128)}', space=vmem, size = 0x12000, scoped, tag = 'internal scratch']
  %s0 = inlined_call_operand.hbm [shape: f32[64,128], index: 0, kind: input, shape index: {}]
  %s1 = inlined_call_operand.hbm [shape: f32[8,32], index: 1, kind: input, shape index: {}]
  %s2 = inlined_call_operand.hbm [shape: f32[8,32], index: 2, kind: input, shape index: {}]
  %s3 = inlined_call_operand.hbm [shape: bf16[32,128], index: 3, kind: input, shape index: {}]
  %s4 = inlined_call_operand.hbm [shape: f32[8,256], index: 4, kind: output, shape index: {0}]
  %s5 = inlined_call_operand.hbm [shape: f32[8,32], index: 5, kind: output, shape index: {1}]
  %s6 = inlined_call_operand.hbm [shape: f32[8,32], index: 6, kind: output, shape index: {2}]
  %7 = xla_tuple %s4, %s5, %s6
  %s8 = sld [smem:[#allocation0]]
  $region58: #{tpu_custom_call.1} parent=0
    _
  %s10 = ssub.s32 1, %s8
  %s11 = scalar_select 0, %s10, %s8
  $region1: #{tpu_custom_call.1} parent=0
    #allocation2 [shape = 'u8[32768]{0}', space=vmem, size = 0x8000, scoped, tag = 'input window, operand 0, single buffered']
    #allocation3 [shape = 's32[1]{0}', space=sflag, size = 0x4, scoped, tag = 'scoped memory for tpu_custom_call.1']
    #allocation4 [shape = 's32[1]{0}', space=sflag, size = 0x4, scoped, tag = 'scoped memory for tpu_custom_call.1']
    #allocation5 [shape = 'u8[4096]{0}', space=vmem, size = 0x1000, scoped, tag = 'input window, operand 1, single buffered']
    #allocation6 [shape = 's32[1]{0}', space=sflag, size = 0x4, scoped, tag = 'scoped memory for tpu_custom_call.1']
    #allocation7 [shape = 'u8[4096]{0}', space=vmem, size = 0x1000, scoped, tag = 'input window, operand 2, single buffered']
    #allocation8 [shape = 'u8[8192]{0}', space=vmem, size = 0x2000, scoped, tag = 'input window, operand 3, single buffered']
    #allocation9 [shape = 's32[1]{0}', space=sflag, size = 0x4, scoped, tag = 'scoped memory for tpu_custom_call.1']
    #allocation10 [shape = 'u8[8192]{0}', space=vmem, size = 0x2000, scoped, tag = 'output window, operand 0, single buffered']
    #allocation11 [shape = 'u8[4096]{0}', space=vmem, size = 0x1000, scoped, tag = 'output window, operand 1, single buffered']
    #allocation12 [shape = 's32[1]{0}', space=sflag, size = 0x4, scoped, tag = 'scoped memory for tpu_custom_call.1']
    #allocation13 [shape = 'u8[4096]{0}', space=vmem, size = 0x1000, scoped, tag = 'output window, operand 2, single buffered']
    %12 = vsyncpa [#allocation3], 0
    %13 = vsyncpa [#allocation6], 0
    %14 = vsyncpa [#allocation9], 0
    %15 = vsyncpa [#allocation4], 0
    %16 = vsyncpa [#allocation12], 0
    // Predicated region
    $region2: #{tpu_custom_call.1} parent=1 // pred_check
      _
    $region3: #{tpu_custom_call.1} parent=1 // pred_check_branch
      %18 = sbr.rel (0) target = $region5
    $region4: #{tpu_custom_call.1} parent=1 // pred_region
      %s20 = ssub.s32 1024, 1024
      %21 = vsyncadd [#allocation3], %s20
      %s22 = sshll.u32 [#allocation2], 4
      %s23 = int_to_ptr.vmem [resolvable:$true] %s22
      %28 = dma.hbm_to_vmem [thread:$0]  %s0, 1024, %s23, [#allocation3], 128, 128, 8
    $region5: #{tpu_custom_call.1} parent=1 // pred_fallthru
      _
    // Predicated region
    $region6: #{tpu_custom_call.1} parent=1 // pred_check
      _
    $region7: #{tpu_custom_call.1} parent=1 // pred_check_branch
      %30 = sbr.rel (0) target = $region9
    $region8: #{tpu_custom_call.1} parent=1 // pred_region
      %s32 = ssub.s32 128, 128
      %33 = vsyncadd [#allocation6], %s32
      %s35 = sshll.u32 [#allocation5], 4
      %s36 = int_to_ptr.vmem [resolvable:$true] %s35
      %38 = dma.hbm_to_vmem [thread:$0]  %s1, 128, %s36, [#allocation6]
    $region9: #{tpu_custom_call.1} parent=1 // pred_fallthru
      _
    // Predicated region
    $region10: #{tpu_custom_call.1} parent=1 // pred_check
      _
    $region11: #{tpu_custom_call.1} parent=1 // pred_check_branch
      %40 = sbr.rel (0) target = $region13
    $region12: #{tpu_custom_call.1} parent=1 // pred_region
      %s42 = ssub.s32 128, 128
      %43 = vsyncadd [#allocation6], %s42
      %s45 = sshll.u32 [#allocation7], 4
      %s46 = int_to_ptr.vmem [resolvable:$true] %s45
      %48 = dma.hbm_to_vmem [thread:$0]  %s2, 128, %s46, [#allocation6]
    $region13: #{tpu_custom_call.1} parent=1 // pred_fallthru
      _
    // Predicated region
    $region14: #{tpu_custom_call.1} parent=1 // pred_check
      _
    $region15: #{tpu_custom_call.1} parent=1 // pred_check_branch
      %50 = sbr.rel (0) target = $region17
    $region16: #{tpu_custom_call.1} parent=1 // pred_region
      %s52 = ssub.s32 256, 256
      %53 = vsyncadd [#allocation9], %s52
      %s54 = sshll.u32 [#allocation8], 4
      %s55 = int_to_ptr.vmem [resolvable:$true] %s54
      %60 = dma.hbm_to_vmem [thread:$0]  %s3, 256, %s55, [#allocation9], 64, 64, 4
    $region17: #{tpu_custom_call.1} parent=1 // pred_fallthru
      _
    // Predicated region
    $region18: #{tpu_custom_call.1} parent=1 // pred_check
      _
    $region19: #{tpu_custom_call.1} parent=1 // pred_check_branch
      %62 = sbr.rel (0) target = $region21
    $region20: #{tpu_custom_call.1} parent=1 // pred_region
      %63 = dma.done [#allocation3], 1024
    $region21: #{tpu_custom_call.1} parent=1 // pred_fallthru
      _
    // Predicated region
    $region22: #{tpu_custom_call.1} parent=1 // pred_check
      _
    $region23: #{tpu_custom_call.1} parent=1 // pred_check_branch
      %65 = sbr.rel (0) target = $region25
    $region24: #{tpu_custom_call.1} parent=1 // pred_region
      %66 = dma.done [#allocation6], 128
    $region25: #{tpu_custom_call.1} parent=1 // pred_fallthru
      _
    // Predicated region
    $region26: #{tpu_custom_call.1} parent=1 // pred_check
      _
    $region27: #{tpu_custom_call.1} parent=1 // pred_check_branch
      %68 = sbr.rel (0) target = $region29
    $region28: #{tpu_custom_call.1} parent=1 // pred_region
      %69 = dma.done [#allocation6], 128
    $region29: #{tpu_custom_call.1} parent=1 // pred_fallthru
      _
    // Predicated region
    $region30: #{tpu_custom_call.1} parent=1 // pred_check
      _
    $region31: #{tpu_custom_call.1} parent=1 // pred_check_branch
      %71 = sbr.rel (0) target = $region33
    $region32: #{tpu_custom_call.1} parent=1 // pred_region
      %72 = dma.done [#allocation9], 256
    $region33: #{tpu_custom_call.1} parent=1 // pred_fallthru
      _
    %v74 = vld [vmem:[#allocation2] sm:$0xff]
    %v75 = vld [vmem:[#allocation2 + $0x8] sm:$0xff]
    %v76 = vld [vmem:[#allocation2 + $0x10] sm:$0xff]
    %v77 = vld [vmem:[#allocation2 + $0x18] sm:$0xff]
    %v78 = vld [vmem:[#allocation2 + $0x20] sm:$0xff]
    %v79 = vld [vmem:[#allocation2 + $0x28] sm:$0xff]
    %v80 = vld [vmem:[#allocation2 + $0x30] sm:$0xff]
    %v81 = vld [vmem:[#allocation2 + $0x38] sm:$0xff]
    %v82 = vld [vmem:[#allocation8] sm:$0xf]
    %v83 = vld [vmem:[#allocation8 + $0x4] sm:$0xf]
    %v84 = vld [vmem:[#allocation8 + $0x8] sm:$0xf]
    %v85 = vld [vmem:[#allocation8 + $0xc] sm:$0xf]
    %v86 = vld [vmem:[#allocation5] sm:$0xff]
    %v87 = vld [vmem:[#allocation7] sm:$0xff]
    %v88 = vpack.c.bf16 %v86, %v86
    %v93 = vunpack.c.l.b16 %v82
    %v94 = vunpack.c.l.b16 %v83
    %v95 = vunpack.c.l.b16 %v84
    %v96 = vunpack.c.l.b16 %v85
    %v97 = vpack.c.b16 %v94, %v93
    %v98 = vpack.c.b16 %v96, %v95
    %vm101 = vcmask 261120
    %v103 = vsel %vm101, %v88, 0
    %105 = vmatprep.subr.bf16.mxu0 0
    %106 = vmatpush1.bf16.msra.mxu0 %v97
    %107 = vmatprep.subr.bf16.mxu0 0
    %108 = vmatpush1.bf16.msra.mxu0 %v98
    %109 = vmatprep.subr.bf16.mxu0 0
    %110 = vmatpush1.bf16.msra.mxu0 0
    %111 = vmatprep.subr.bf16.mxu0 0
    %112 = vmatpush1.bf16.msra.mxu0 0
    %113 = vmatprep.subr.bf16.mxu0 0
    %114 = vmatpush1.bf16.msra.mxu0 0
    %115 = vmatprep.subr.bf16.mxu0 0
    %116 = vmatpush1.bf16.msra.mxu0 0
    %117 = vmatprep.subr.bf16.mxu0 0
    %118 = vmatpush1.bf16.msra.mxu0 0
    %119 = vmatprep.subr.bf16.mxu0 0
    %120 = vmatpush1.bf16.msra.mxu0 0
    %121 = vmatprep.subr.bf16.mxu0 0
    %122 = vmatpush1.bf16.msra.mxu0 0
    %123 = vmatprep.subr.bf16.mxu0 0
    %124 = vmatpush1.bf16.msra.mxu0 0
    %125 = vmatprep.subr.bf16.mxu0 0
    %126 = vmatpush1.bf16.msra.mxu0 0
    %127 = vmatprep.subr.bf16.mxu0 0
    %128 = vmatpush1.bf16.msra.mxu0 0
    %129 = vmatprep.subr.bf16.mxu0 0
    %130 = vmatpush1.bf16.msra.mxu0 0
    %131 = vmatprep.subr.bf16.mxu0 0
    %132 = vmatpush1.bf16.msra.mxu0 0
    %133 = vmatprep.subr.bf16.mxu0 0
    %134 = vmatpush1.bf16.msra.mxu0 0
    %135 = vmatprep.subr.bf16.mxu0 0
    %136 = vmatpush1.bf16.msra.mxu0 0
    %137 = vmatprep.mubr.bf16.mxu0 0
    %138 = vmatmul.mubr.bf16.gmra.mrb[0].mxu0 %v103
    %v139 = vpop.f32.mrb[0].mxu0
    %v140 = vadd.f32 0.0, %v139
    %v141 = vpop.f32.mrb[0].mxu0
    %v142 = vpop.f32.mrb[0].mxu0
    %v143 = vpop.f32.mrb[0].mxu0
    %144 = vdwg.mxu0
    %v145 = vadd.f32 %v74, %v140
    %v146 = vmul.f32 %v145, 0.5
    %v147 = vtanh.pop %v146
    %v148 = vmul.f32 %v147, 0.5
    %v149 = vadd.f32 %v148, 0.5
    %v150 = vtanh.pop %v145
    %152 = vrot.lane.b32.xlu0 %v87, 32
    %v153 = vpop.permute.xlu0 %152
    %v155 = vmul.f32 %v149, %v153
    %157 = vrot.lane.b32.xlu0 %v150, 64
    %v158 = vpop.permute.xlu0 %157
    %v160 = vmul.f32 %v149, %v158
    %162 = vrot.lane.b32.xlu0 %v160, 32
    %v163 = vpop.permute.xlu0 %162
    %v165 = vadd.f32 %v155, %v163
    %v166 = vtanh.pop %v165
    %168 = vrot.lane.b32.xlu0 %v166, 64
    %v169 = vpop.permute.xlu0 %168
    %v171 = vmul.f32 %v149, %v169
    %v172 = vpack.c.bf16 %v171, %v171
    %174 = vrot.lane.b32.xlu0 %v172, 32
    %v175 = vpop.permute.xlu0 %174
    %v177 = vsel %vm101, %v175, 0
    %179 = vmatprep.subr.bf16.mxu0 0
    %180 = vmatpush1.bf16.msra.mxu0 %v97
    %181 = vmatprep.subr.bf16.mxu0 0
    %182 = vmatpush1.bf16.msra.mxu0 %v98
    %183 = vmatprep.subr.bf16.mxu0 0
    %184 = vmatpush1.bf16.msra.mxu0 0
    %185 = vmatprep.subr.bf16.mxu0 0
    %186 = vmatpush1.bf16.msra.mxu0 0
    %187 = vmatprep.subr.bf16.mxu0 0
    %188 = vmatpush1.bf16.msra.mxu0 0
    %189 = vmatprep.subr.bf16.mxu0 0
    %190 = vmatpush1.bf16.msra.mxu0 0
    %191 = vmatprep.subr.bf16.mxu0 0
    %192 = vmatpush1.bf16.msra.mxu0 0
    %193 = vmatprep.subr.bf16.mxu0 0
    %194 = vmatpush1.bf16.msra.mxu0 0
    %195 = vmatprep.subr.bf16.mxu0 0
    %196 = vmatpush1.bf16.msra.mxu0 0
    %197 = vmatprep.subr.bf16.mxu0 0
    %198 = vmatpush1.bf16.msra.mxu0 0
    %199 = vmatprep.subr.bf16.mxu0 0
    %200 = vmatpush1.bf16.msra.mxu0 0
    %201 = vmatprep.subr.bf16.mxu0 0
    %202 = vmatpush1.bf16.msra.mxu0 0
    %203 = vmatprep.subr.bf16.mxu0 0
    %204 = vmatpush1.bf16.msra.mxu0 0
    %205 = vmatprep.subr.bf16.mxu0 0
    %206 = vmatpush1.bf16.msra.mxu0 0
    %207 = vmatprep.subr.bf16.mxu0 0
    %208 = vmatpush1.bf16.msra.mxu0 0
    %209 = vmatprep.subr.bf16.mxu0 0
    %210 = vmatpush1.bf16.msra.mxu0 0
    %211 = vmatprep.mubr.bf16.mxu0 0
    %212 = vmatmul.mubr.bf16.gmra.mrb[0].mxu0 %v177
    %v213 = vpop.f32.mrb[0].mxu0
    %v214 = vadd.f32 0.0, %v213
    %v215 = vpop.f32.mrb[0].mxu0
    %v216 = vpop.f32.mrb[0].mxu0
    %v217 = vpop.f32.mrb[0].mxu0
    %218 = vdwg.mxu0
    %v219 = vadd.f32 %v75, %v214
    %v220 = vmul.f32 %v219, 0.5
    %v221 = vtanh.pop %v220
    %v222 = vmul.f32 %v221, 0.5
    %v223 = vadd.f32 %v222, 0.5
    %v224 = vtanh.pop %v219
    %v225 = vmul.f32 %v223, %v165
    %227 = vrot.lane.b32.xlu0 %v224, 64
    %v228 = vpop.permute.xlu0 %227
    %v230 = vmul.f32 %v223, %v228
    %232 = vrot.lane.b32.xlu0 %v230, 32
    %v233 = vpop.permute.xlu0 %232
    %v235 = vadd.f32 %v225, %v233
    %v236 = vtanh.pop %v235
    %238 = vrot.lane.b32.xlu0 %v236, 64
    %v239 = vpop.permute.xlu0 %238
    %v241 = vmul.f32 %v223, %v239
    %v242 = vpack.c.bf16 %v241, %v241
    %244 = vrot.lane.b32.xlu0 %v242, 32
    %v245 = vpop.permute.xlu0 %244
    %v247 = vsel %vm101, %v245, 0
    %249 = vmatprep.subr.bf16.mxu0 0
    %250 = vmatpush1.bf16.msra.mxu0 %v97
    %251 = vmatprep.subr.bf16.mxu0 0
    %252 = vmatpush1.bf16.msra.mxu0 %v98
    %253 = vmatprep.subr.bf16.mxu0 0
    %254 = vmatpush1.bf16.msra.mxu0 0
    %255 = vmatprep.subr.bf16.mxu0 0
    %256 = vmatpush1.bf16.msra.mxu0 0
    %257 = vmatprep.subr.bf16.mxu0 0
    %258 = vmatpush1.bf16.msra.mxu0 0
    %259 = vmatprep.subr.bf16.mxu0 0
    %260 = vmatpush1.bf16.msra.mxu0 0
    %261 = vmatprep.subr.bf16.mxu0 0
    %262 = vmatpush1.bf16.msra.mxu0 0
    %263 = vmatprep.subr.bf16.mxu0 0
    %264 = vmatpush1.bf16.msra.mxu0 0
    %265 = vmatprep.subr.bf16.mxu0 0
    %266 = vmatpush1.bf16.msra.mxu0 0
    %267 = vmatprep.subr.bf16.mxu0 0
    %268 = vmatpush1.bf16.msra.mxu0 0
    %269 = vmatprep.subr.bf16.mxu0 0
    %270 = vmatpush1.bf16.msra.mxu0 0
    %271 = vmatprep.subr.bf16.mxu0 0
    %272 = vmatpush1.bf16.msra.mxu0 0
    %273 = vmatprep.subr.bf16.mxu0 0
    %274 = vmatpush1.bf16.msra.mxu0 0
    %275 = vmatprep.subr.bf16.mxu0 0
    %276 = vmatpush1.bf16.msra.mxu0 0
    %277 = vmatprep.subr.bf16.mxu0 0
    %278 = vmatpush1.bf16.msra.mxu0 0
    %279 = vmatprep.subr.bf16.mxu0 0
    %280 = vmatpush1.bf16.msra.mxu0 0
    %281 = vmatprep.mubr.bf16.mxu0 0
    %282 = vmatmul.mubr.bf16.gmra.mrb[0].mxu0 %v247
    %v283 = vpop.f32.mrb[0].mxu0
    %v284 = vadd.f32 0.0, %v283
    %v285 = vpop.f32.mrb[0].mxu0
    %v286 = vpop.f32.mrb[0].mxu0
    %v287 = vpop.f32.mrb[0].mxu0
    %288 = vdwg.mxu0
    %v289 = vadd.f32 %v76, %v284
    %v290 = vmul.f32 %v289, 0.5
    %v291 = vtanh.pop %v290
    %v292 = vmul.f32 %v291, 0.5
    %v293 = vadd.f32 %v292, 0.5
    %v294 = vtanh.pop %v289
    %v295 = vmul.f32 %v293, %v235
    %297 = vrot.lane.b32.xlu0 %v294, 64
    %v298 = vpop.permute.xlu0 %297
    %v300 = vmul.f32 %v293, %v298
    %302 = vrot.lane.b32.xlu0 %v300, 32
    %v303 = vpop.permute.xlu0 %302
    %v305 = vadd.f32 %v295, %v303
    %v306 = vtanh.pop %v305
    %308 = vrot.lane.b32.xlu0 %v306, 64
    %v309 = vpop.permute.xlu0 %308
    %v311 = vmul.f32 %v293, %v309
    %v312 = vpack.c.bf16 %v311, %v311
    %314 = vrot.lane.b32.xlu0 %v312, 32
    %v315 = vpop.permute.xlu0 %314
    %v317 = vsel %vm101, %v315, 0
    %319 = vmatprep.subr.bf16.mxu0 0
    %320 = vmatpush1.bf16.msra.mxu0 %v97
    %321 = vmatprep.subr.bf16.mxu0 0
    %322 = vmatpush1.bf16.msra.mxu0 %v98
    %323 = vmatprep.subr.bf16.mxu0 0
    %324 = vmatpush1.bf16.msra.mxu0 0
    %325 = vmatprep.subr.bf16.mxu0 0
    %326 = vmatpush1.bf16.msra.mxu0 0
    %327 = vmatprep.subr.bf16.mxu0 0
    %328 = vmatpush1.bf16.msra.mxu0 0
    %329 = vmatprep.subr.bf16.mxu0 0
    %330 = vmatpush1.bf16.msra.mxu0 0
    %331 = vmatprep.subr.bf16.mxu0 0
    %332 = vmatpush1.bf16.msra.mxu0 0
    %333 = vmatprep.subr.bf16.mxu0 0
    %334 = vmatpush1.bf16.msra.mxu0 0
    %335 = vmatprep.subr.bf16.mxu0 0
    %336 = vmatpush1.bf16.msra.mxu0 0
    %337 = vmatprep.subr.bf16.mxu0 0
    %338 = vmatpush1.bf16.msra.mxu0 0
    %339 = vmatprep.subr.bf16.mxu0 0
    %340 = vmatpush1.bf16.msra.mxu0 0
    %341 = vmatprep.subr.bf16.mxu0 0
    %342 = vmatpush1.bf16.msra.mxu0 0
    %343 = vmatprep.subr.bf16.mxu0 0
    %344 = vmatpush1.bf16.msra.mxu0 0
    %345 = vmatprep.subr.bf16.mxu0 0
    %346 = vmatpush1.bf16.msra.mxu0 0
    %347 = vmatprep.subr.bf16.mxu0 0
    %348 = vmatpush1.bf16.msra.mxu0 0
    %349 = vmatprep.subr.bf16.mxu0 0
    %350 = vmatpush1.bf16.msra.mxu0 0
    %351 = vmatprep.mubr.bf16.mxu0 0
    %352 = vmatmul.mubr.bf16.gmra.mrb[0].mxu0 %v317
    %v353 = vpop.f32.mrb[0].mxu0
    %v354 = vadd.f32 0.0, %v353
    %v355 = vpop.f32.mrb[0].mxu0
    %v356 = vpop.f32.mrb[0].mxu0
    %v357 = vpop.f32.mrb[0].mxu0
    %358 = vdwg.mxu0
    %v359 = vadd.f32 %v77, %v354
    %v360 = vmul.f32 %v359, 0.5
    %v361 = vtanh.pop %v360
    %v362 = vmul.f32 %v361, 0.5
    %v363 = vadd.f32 %v362, 0.5
    %v364 = vtanh.pop %v359
    %v365 = vmul.f32 %v363, %v305
    %367 = vrot.lane.b32.xlu0 %v364, 64
    %v368 = vpop.permute.xlu0 %367
    %v370 = vmul.f32 %v363, %v368
    %372 = vrot.lane.b32.xlu0 %v370, 32
    %v373 = vpop.permute.xlu0 %372
    %v375 = vadd.f32 %v365, %v373
    %v376 = vtanh.pop %v375
    %378 = vrot.lane.b32.xlu0 %v376, 64
    %v379 = vpop.permute.xlu0 %378
    %v381 = vmul.f32 %v363, %v379
    %v382 = vpack.c.bf16 %v381, %v381
    %384 = vrot.lane.b32.xlu0 %v382, 32
    %v385 = vpop.permute.xlu0 %384
    %v387 = vsel %vm101, %v385, 0
    %389 = vmatprep.subr.bf16.mxu0 0
    %390 = vmatpush1.bf16.msra.mxu0 %v97
    %391 = vmatprep.subr.bf16.mxu0 0
    %392 = vmatpush1.bf16.msra.mxu0 %v98
    %393 = vmatprep.subr.bf16.mxu0 0
    %394 = vmatpush1.bf16.msra.mxu0 0
    %395 = vmatprep.subr.bf16.mxu0 0
    %396 = vmatpush1.bf16.msra.mxu0 0
    %397 = vmatprep.subr.bf16.mxu0 0
    %398 = vmatpush1.bf16.msra.mxu0 0
    %399 = vmatprep.subr.bf16.mxu0 0
    %400 = vmatpush1.bf16.msra.mxu0 0
    %401 = vmatprep.subr.bf16.mxu0 0
    %402 = vmatpush1.bf16.msra.mxu0 0
    %403 = vmatprep.subr.bf16.mxu0 0
    %404 = vmatpush1.bf16.msra.mxu0 0
    %405 = vmatprep.subr.bf16.mxu0 0
    %406 = vmatpush1.bf16.msra.mxu0 0
    %407 = vmatprep.subr.bf16.mxu0 0
    %408 = vmatpush1.bf16.msra.mxu0 0
    %409 = vmatprep.subr.bf16.mxu0 0
    %410 = vmatpush1.bf16.msra.mxu0 0
    %411 = vmatprep.subr.bf16.mxu0 0
    %412 = vmatpush1.bf16.msra.mxu0 0
    %413 = vmatprep.subr.bf16.mxu0 0
    %414 = vmatpush1.bf16.msra.mxu0 0
    %415 = vmatprep.subr.bf16.mxu0 0
    %416 = vmatpush1.bf16.msra.mxu0 0
    %417 = vmatprep.subr.bf16.mxu0 0
    %418 = vmatpush1.bf16.msra.mxu0 0
    %419 = vmatprep.subr.bf16.mxu0 0
    %420 = vmatpush1.bf16.msra.mxu0 0
    %421 = vmatprep.mubr.bf16.mxu0 0
    %422 = vmatmul.mubr.bf16.gmra.mrb[0].mxu0 %v387
    %v423 = vpop.f32.mrb[0].mxu0
    %v424 = vadd.f32 0.0, %v423
    %v425 = vpop.f32.mrb[0].mxu0
    %v426 = vpop.f32.mrb[0].mxu0
    %v427 = vpop.f32.mrb[0].mxu0
    %428 = vdwg.mxu0
    %v429 = vadd.f32 %v78, %v424
    %v430 = vmul.f32 %v429, 0.5
    %v431 = vtanh.pop %v430
    %v432 = vmul.f32 %v431, 0.5
    %v433 = vadd.f32 %v432, 0.5
    %v434 = vtanh.pop %v429
    %v435 = vmul.f32 %v433, %v375
    %437 = vrot.lane.b32.xlu0 %v434, 64
    %v438 = vpop.permute.xlu0 %437
    %v440 = vmul.f32 %v433, %v438
    %442 = vrot.lane.b32.xlu0 %v440, 32
    %v443 = vpop.permute.xlu0 %442
    %v445 = vadd.f32 %v435, %v443
    %v446 = vtanh.pop %v445
    %448 = vrot.lane.b32.xlu0 %v446, 64
    %v449 = vpop.permute.xlu0 %448
    %v451 = vmul.f32 %v433, %v449
    %v452 = vpack.c.bf16 %v451, %v451
    %454 = vrot.lane.b32.xlu0 %v452, 32
    %v455 = vpop.permute.xlu0 %454
    %v457 = vsel %vm101, %v455, 0
    %459 = vmatprep.subr.bf16.mxu0 0
    %460 = vmatpush1.bf16.msra.mxu0 %v97
    %461 = vmatprep.subr.bf16.mxu0 0
    %462 = vmatpush1.bf16.msra.mxu0 %v98
    %463 = vmatprep.subr.bf16.mxu0 0
    %464 = vmatpush1.bf16.msra.mxu0 0
    %465 = vmatprep.subr.bf16.mxu0 0
    %466 = vmatpush1.bf16.msra.mxu0 0
    %467 = vmatprep.subr.bf16.mxu0 0
    %468 = vmatpush1.bf16.msra.mxu0 0
    %469 = vmatprep.subr.bf16.mxu0 0
    %470 = vmatpush1.bf16.msra.mxu0 0
    %471 = vmatprep.subr.bf16.mxu0 0
    %472 = vmatpush1.bf16.msra.mxu0 0
    %473 = vmatprep.subr.bf16.mxu0 0
    %474 = vmatpush1.bf16.msra.mxu0 0
    %475 = vmatprep.subr.bf16.mxu0 0
    %476 = vmatpush1.bf16.msra.mxu0 0
    %477 = vmatprep.subr.bf16.mxu0 0
    %478 = vmatpush1.bf16.msra.mxu0 0
    %479 = vmatprep.subr.bf16.mxu0 0
    %480 = vmatpush1.bf16.msra.mxu0 0
    %481 = vmatprep.subr.bf16.mxu0 0
    %482 = vmatpush1.bf16.msra.mxu0 0
    %483 = vmatprep.subr.bf16.mxu0 0
    %484 = vmatpush1.bf16.msra.mxu0 0
    %485 = vmatprep.subr.bf16.mxu0 0
    %486 = vmatpush1.bf16.msra.mxu0 0
    %487 = vmatprep.subr.bf16.mxu0 0
    %488 = vmatpush1.bf16.msra.mxu0 0
    %489 = vmatprep.subr.bf16.mxu0 0
    %490 = vmatpush1.bf16.msra.mxu0 0
    %491 = vmatprep.mubr.bf16.mxu0 0
    %492 = vmatmul.mubr.bf16.gmra.mrb[0].mxu0 %v457
    %v493 = vpop.f32.mrb[0].mxu0
    %v494 = vadd.f32 0.0, %v493
    %v495 = vpop.f32.mrb[0].mxu0
    %v496 = vpop.f32.mrb[0].mxu0
    %v497 = vpop.f32.mrb[0].mxu0
    %498 = vdwg.mxu0
    %v499 = vadd.f32 %v79, %v494
    %v500 = vmul.f32 %v499, 0.5
    %v501 = vtanh.pop %v500
    %v502 = vmul.f32 %v501, 0.5
    %v503 = vadd.f32 %v502, 0.5
    %v504 = vtanh.pop %v499
    %v505 = vmul.f32 %v503, %v445
    %507 = vrot.lane.b32.xlu0 %v504, 64
    %v508 = vpop.permute.xlu0 %507
    %v510 = vmul.f32 %v503, %v508
    %512 = vrot.lane.b32.xlu0 %v510, 32
    %v513 = vpop.permute.xlu0 %512
    %v515 = vadd.f32 %v505, %v513
    %v516 = vtanh.pop %v515
    %518 = vrot.lane.b32.xlu0 %v516, 64
    %v519 = vpop.permute.xlu0 %518
    %v521 = vmul.f32 %v503, %v519
    %v522 = vpack.c.bf16 %v521, %v521
    %524 = vrot.lane.b32.xlu0 %v522, 32
    %v525 = vpop.permute.xlu0 %524
    %v527 = vsel %vm101, %v525, 0
    %529 = vmatprep.subr.bf16.mxu0 0
    %530 = vmatpush1.bf16.msra.mxu0 %v97
    %531 = vmatprep.subr.bf16.mxu0 0
    %532 = vmatpush1.bf16.msra.mxu0 %v98
    %533 = vmatprep.subr.bf16.mxu0 0
    %534 = vmatpush1.bf16.msra.mxu0 0
    %535 = vmatprep.subr.bf16.mxu0 0
    %536 = vmatpush1.bf16.msra.mxu0 0
    %537 = vmatprep.subr.bf16.mxu0 0
    %538 = vmatpush1.bf16.msra.mxu0 0
    %539 = vmatprep.subr.bf16.mxu0 0
    %540 = vmatpush1.bf16.msra.mxu0 0
    %541 = vmatprep.subr.bf16.mxu0 0
    %542 = vmatpush1.bf16.msra.mxu0 0
    %543 = vmatprep.subr.bf16.mxu0 0
    %544 = vmatpush1.bf16.msra.mxu0 0
    %545 = vmatprep.subr.bf16.mxu0 0
    %546 = vmatpush1.bf16.msra.mxu0 0
    %547 = vmatprep.subr.bf16.mxu0 0
    %548 = vmatpush1.bf16.msra.mxu0 0
    %549 = vmatprep.subr.bf16.mxu0 0
    %550 = vmatpush1.bf16.msra.mxu0 0
    %551 = vmatprep.subr.bf16.mxu0 0
    %552 = vmatpush1.bf16.msra.mxu0 0
    %553 = vmatprep.subr.bf16.mxu0 0
    %554 = vmatpush1.bf16.msra.mxu0 0
    %555 = vmatprep.subr.bf16.mxu0 0
    %556 = vmatpush1.bf16.msra.mxu0 0
    %557 = vmatprep.subr.bf16.mxu0 0
    %558 = vmatpush1.bf16.msra.mxu0 0
    %559 = vmatprep.subr.bf16.mxu0 0
    %560 = vmatpush1.bf16.msra.mxu0 0
    %561 = vmatprep.mubr.bf16.mxu0 0
    %562 = vmatmul.mubr.bf16.gmra.mrb[0].mxu0 %v527
    %v563 = vpop.f32.mrb[0].mxu0
    %v564 = vadd.f32 0.0, %v563
    %v565 = vpop.f32.mrb[0].mxu0
    %v566 = vpop.f32.mrb[0].mxu0
    %v567 = vpop.f32.mrb[0].mxu0
    %568 = vdwg.mxu0
    %v569 = vadd.f32 %v80, %v564
    %v570 = vmul.f32 %v569, 0.5
    %v571 = vtanh.pop %v570
    %v572 = vmul.f32 %v571, 0.5
    %v573 = vadd.f32 %v572, 0.5
    %v574 = vtanh.pop %v569
    %v575 = vmul.f32 %v573, %v515
    %577 = vrot.lane.b32.xlu0 %v574, 64
    %v578 = vpop.permute.xlu0 %577
    %v580 = vmul.f32 %v573, %v578
    %582 = vrot.lane.b32.xlu0 %v580, 32
    %v583 = vpop.permute.xlu0 %582
    %v585 = vadd.f32 %v575, %v583
    %v586 = vtanh.pop %v585
    %588 = vrot.lane.b32.xlu0 %v586, 64
    %v589 = vpop.permute.xlu0 %588
    %v591 = vmul.f32 %v573, %v589
    %v592 = vpack.c.bf16 %v591, %v591
    %594 = vrot.lane.b32.xlu0 %v592, 32
    %v595 = vpop.permute.xlu0 %594
    %v597 = vsel %vm101, %v595, 0
    %599 = vmatprep.subr.bf16.mxu0 0
    %600 = vmatpush1.bf16.msra.mxu0 %v97
    %601 = vmatprep.subr.bf16.mxu0 0
    %602 = vmatpush1.bf16.msra.mxu0 %v98
    %603 = vmatprep.subr.bf16.mxu0 0
    %604 = vmatpush1.bf16.msra.mxu0 0
    %605 = vmatprep.subr.bf16.mxu0 0
    %606 = vmatpush1.bf16.msra.mxu0 0
    %607 = vmatprep.subr.bf16.mxu0 0
    %608 = vmatpush1.bf16.msra.mxu0 0
    %609 = vmatprep.subr.bf16.mxu0 0
    %610 = vmatpush1.bf16.msra.mxu0 0
    %611 = vmatprep.subr.bf16.mxu0 0
    %612 = vmatpush1.bf16.msra.mxu0 0
    %613 = vmatprep.subr.bf16.mxu0 0
    %614 = vmatpush1.bf16.msra.mxu0 0
    %615 = vmatprep.subr.bf16.mxu0 0
    %616 = vmatpush1.bf16.msra.mxu0 0
    %617 = vmatprep.subr.bf16.mxu0 0
    %618 = vmatpush1.bf16.msra.mxu0 0
    %619 = vmatprep.subr.bf16.mxu0 0
    %620 = vmatpush1.bf16.msra.mxu0 0
    %621 = vmatprep.subr.bf16.mxu0 0
    %622 = vmatpush1.bf16.msra.mxu0 0
    %623 = vmatprep.subr.bf16.mxu0 0
    %624 = vmatpush1.bf16.msra.mxu0 0
    %625 = vmatprep.subr.bf16.mxu0 0
    %626 = vmatpush1.bf16.msra.mxu0 0
    %627 = vmatprep.subr.bf16.mxu0 0
    %628 = vmatpush1.bf16.msra.mxu0 0
    %629 = vmatprep.subr.bf16.mxu0 0
    %630 = vmatpush1.bf16.msra.mxu0 0
    %631 = vmatprep.mubr.bf16.mxu0 0
    %632 = vmatmul.mubr.bf16.gmra.mrb[0].mxu0 %v597
    %v633 = vpop.f32.mrb[0].mxu0
    %v634 = vadd.f32 0.0, %v633
    %v635 = vpop.f32.mrb[0].mxu0
    %v636 = vpop.f32.mrb[0].mxu0
    %v637 = vpop.f32.mrb[0].mxu0
    %638 = vdwg.mxu0
    %v639 = vadd.f32 %v81, %v634
    %v640 = vmul.f32 %v639, 0.5
    %v641 = vtanh.pop %v640
    %v642 = vmul.f32 %v641, 0.5
    %v643 = vadd.f32 %v642, 0.5
    %v644 = vtanh.pop %v639
    %v645 = vmul.f32 %v643, %v585
    %647 = vrot.lane.b32.xlu0 %v644, 64
    %v648 = vpop.permute.xlu0 %647
    %v650 = vmul.f32 %v643, %v648
    %652 = vrot.lane.b32.xlu0 %v650, 32
    %v653 = vpop.permute.xlu0 %652
    %v655 = vadd.f32 %v645, %v653
    %v656 = vtanh.pop %v655
    %658 = vrot.lane.b32.xlu0 %v656, 64
    %v659 = vpop.permute.xlu0 %658
    %v661 = vmul.f32 %v643, %v659
    %663 = vrot.lane.b32.xlu0 %v171, 32
    %v664 = vpop.permute.xlu0 %663
    %667 = vrot.lane.b32.xlu0 %v241, 64
    %v668 = vpop.permute.xlu0 %667
    %671 = vrot.lane.b32.xlu0 %v311, 96
    %v672 = vpop.permute.xlu0 %671
    %675 = vrot.lane.b32.xlu0 %v451, 32
    %v676 = vpop.permute.xlu0 %675
    %679 = vrot.lane.b32.xlu0 %v521, 64
    %v680 = vpop.permute.xlu0 %679
    %683 = vrot.lane.b32.xlu0 %v591, 96
    %v684 = vpop.permute.xlu0 %683
    %v686 = vsel %vm101, %v664, %v668
    %vm687 = vcmask 523264
    %v688 = vsel %vm687, %v686, %v672
    %vm689 = vcmask 785408
    %v690 = vsel %vm689, %v688, %v381
    %v691 = vsel %vm101, %v676, %v680
    %v692 = vsel %vm687, %v691, %v684
    %v693 = vsel %vm689, %v692, %v661
    %694 = vst [vmem:[#allocation10] sm:$0xff] %v690
    %695 = vst [vmem:[#allocation10 + $0x8] sm:$0xff] %v693
    %697 = vrot.lane.b32.xlu0 %v661, 32
    %v698 = vpop.permute.xlu0 %697
    %700 = vst.msk [vmem:[#allocation11] sm:$0xff] %vm101, %v698
    %702 = vrot.lane.b32.xlu0 %v655, 96
    %v703 = vpop.permute.xlu0 %702
    %705 = vst.msk [vmem:[#allocation13] sm:$0xff] %vm101, %v703
    // Predicated region
    $region34: #{tpu_custom_call.1} parent=1 // pred_check
      _
    $region35: #{tpu_custom_call.1} parent=1 // pred_check_branch
      %707 = sbr.rel (0) target = $region37
    $region36: #{tpu_custom_call.1} parent=1 // pred_region
      %s709 = ssub.s32 256, 256
      %710 = vsyncadd [#allocation4], %s709
      %s712 = sshll.u32 [#allocation10], 4
      %s713 = int_to_ptr.vmem [resolvable:$true] %s712
      %715 = dma.vmem_to_hbm [thread:$0]  %s713, 256, %s4, [#allocation4]
    $region37: #{tpu_custom_call.1} parent=1 // pred_fallthru
      _
    // Predicated region
    $region38: #{tpu_custom_call.1} parent=1 // pred_check
      _
    $region39: #{tpu_custom_call.1} parent=1 // pred_check_branch
      %717 = sbr.rel (0) target = $region41
    $region40: #{tpu_custom_call.1} parent=1 // pred_region
      %s719 = ssub.s32 128, 128
      %720 = vsyncadd [#allocation12], %s719
      %s722 = sshll.u32 [#allocation11], 4
      %s723 = int_to_ptr.vmem [resolvable:$true] %s722
      %725 = dma.vmem_to_hbm [thread:$0]  %s723, 128, %s5, [#allocation12]
    $region41: #{tpu_custom_call.1} parent=1 // pred_fallthru
      _
    // Predicated region
    $region42: #{tpu_custom_call.1} parent=1 // pred_check
      _
    $region43: #{tpu_custom_call.1} parent=1 // pred_check_branch
      %727 = sbr.rel (0) target = $region45
    $region44: #{tpu_custom_call.1} parent=1 // pred_region
      %s729 = ssub.s32 128, 128
      %730 = vsyncadd [#allocation12], %s729
      %s732 = sshll.u32 [#allocation13], 4
      %s733 = int_to_ptr.vmem [resolvable:$true] %s732
      %735 = dma.vmem_to_hbm [thread:$0]  %s733, 128, %s6, [#allocation12]
    $region45: #{tpu_custom_call.1} parent=1 // pred_fallthru
      _
    // Predicated region
    $region46: #{tpu_custom_call.1} parent=1 // pred_check
      _
    $region47: #{tpu_custom_call.1} parent=1 // pred_check_branch
      %737 = sbr.rel (0) target = $region49
    $region48: #{tpu_custom_call.1} parent=1 // pred_region
      %738 = dma.done [#allocation4], 256
    $region49: #{tpu_custom_call.1} parent=1 // pred_fallthru
      _
    // Predicated region
    $region50: #{tpu_custom_call.1} parent=1 // pred_check
      _
    $region51: #{tpu_custom_call.1} parent=1 // pred_check_branch
      %740 = sbr.rel (0) target = $region53
    $region52: #{tpu_custom_call.1} parent=1 // pred_region
      %741 = dma.done [#allocation12], 128
    $region53: #{tpu_custom_call.1} parent=1 // pred_fallthru
      _
    // Predicated region
    $region54: #{tpu_custom_call.1} parent=1 // pred_check
      _
    $region55: #{tpu_custom_call.1} parent=1 // pred_check_branch
      %743 = sbr.rel (0) target = $region57
    $region56: #{tpu_custom_call.1} parent=1 // pred_region
      %744 = dma.done [#allocation12], 128
    $region57: #{tpu_custom_call.1} parent=1 // pred_fallthru
      _
    %745 = vsyncpa [#allocation3], 1
    %746 = vsyncpa [#allocation6], 1
    %747 = vsyncpa [#allocation9], 1
    %748 = vsyncpa [#allocation4], 1
    %749 = vsyncpa [#allocation12], 1

</llo_original>
